<compile_context>
chip_gen: v7x
topology: tpu7x:2x2x1
jax: 0.10.0
libtpu: 0.0.40
codegen_flags: <defaults>
</compile_context>

<pallas_src>
import jax
import jax.numpy as jnp
from jax.experimental import pallas as pl
from jax.experimental.pallas import tpu as pltpu

BETA_MIN = 1e-4
BETA_INIT = 0.1  # deterministic parameter init (params_init={'beta': 0.1})

LANES = 128
SUBLANES = 8
MAX_BLOCK_ROWS = 4096   # (4096, 128) f32 = 2 MiB block; 8 MiB double-buffered in+out
MIN_SPLIT_ROWS = 1024   # above this, force >= 2 grid steps (v7x dual-TensorCore)


def _laplace_density_kernel(params_ref, sdf_ref, out_ref):
    # params_ref: (2,) f32 in SMEM = [alpha, half_alpha]
    # sdf_ref:    (block_rows, 128) VMEM tile in the input's native dtype
    # out_ref:    (block_rows, 128) f32 VMEM tile
    alpha = params_ref[0]
    half_alpha = params_ref[1]
    sdf = sdf_ref[...].astype(jnp.float32)
    e = jnp.exp(-jnp.abs(sdf) * alpha)                      # one EUP op / elem
    out_ref[...] = jnp.where(sdf >= 0, half_alpha * e, alpha - half_alpha * e)


def _pick_block_rows(rows):
    """Block-row count: multiple of 8 (or full extent), <= MAX_BLOCK_ROWS,
    and >= 2 grid steps when the slab is big enough to shard across 2 TCs."""
    if rows > MAX_BLOCK_ROWS:
        return MAX_BLOCK_ROWS
    if rows >= MIN_SPLIT_ROWS:
        half = (rows + 1) // 2
        return ((half + SUBLANES - 1) // SUBLANES) * SUBLANES
    return rows  # full extent (allowed even when rows % 8 != 0)


def density_forward(sdf, beta_param, beta=None):
    """Laplace density forward. `sdf` may be any shape; elementwise output (f32)."""
    orig_shape = sdf.shape

    # Effective beta / hoisted scalars (plain-JAX glue, LaplaceDensity.get_beta()).
    if beta is None:
        beta_eff = jnp.abs(jnp.asarray(beta_param, jnp.float32)) + BETA_MIN
    else:
        beta_eff = jnp.asarray(beta, jnp.float32)
    if beta_eff.size != 1:
        # Scalar-only assumption for the SMEM param pack; per-point beta is not
        # supported by this kernel.
        raise ValueError("density_forward expects a scalar beta / beta_param")
    beta_eff = beta_eff.reshape(())
    alpha = 1.0 / beta_eff
    params = jnp.stack([alpha, 0.5 * alpha]).astype(jnp.float32)  # (2,) SMEM scalars

    # Flatten to a lane-dense [rows, 128] slab; pad only to a lane multiple.
    flat = sdf.reshape(-1)
    n = flat.shape[0]
    n_pad = (-n) % LANES                     # <= 127 elements, usually 0
    if n_pad:
        flat = jnp.pad(flat, (0, n_pad))
    rows = flat.shape[0] // LANES
    slab = flat.reshape(rows, LANES)

    block_rows = _pick_block_rows(rows)
    grid = (pl.cdiv(rows, block_rows),)      # partial final row-block is masked

    n_total = rows * LANES
    cost = pl.CostEstimate(
        flops=8 * n_total,
        transcendentals=n_total,
        bytes_accessed=n_total * (slab.dtype.itemsize + 4),
    )

    out_slab = pl.pallas_call(
        _laplace_density_kernel,
        out_shape=jax.ShapeDtypeStruct((rows, LANES), jnp.float32),
        grid_spec=pltpu.PrefetchScalarGridSpec(
            num_scalar_prefetch=0,
            grid=grid,
            in_specs=[
                pl.BlockSpec(memory_space=pltpu.MemorySpace.SMEM),
                pl.BlockSpec((block_rows, LANES), lambda i: (i, 0)),
            ],
            out_specs=pl.BlockSpec((block_rows, LANES), lambda i: (i, 0)),
        ),
        compiler_params=pltpu.CompilerParams(
            dimension_semantics=("parallel",),
        ),
        cost_estimate=cost,
    )(params, slab)

    out_flat = out_slab.reshape(-1)
    if n_pad:
        out_flat = out_flat[:n]
    return out_flat.reshape(orig_shape)


def density_reference(sdf, beta_param, beta=None):
    sdf = sdf.astype(jnp.float32)
    if beta is None:
        beta = jnp.abs(jnp.asarray(beta_param, jnp.float32)) + BETA_MIN
    alpha = 1.0 / beta
    return alpha * (0.5 + 0.5 * jnp.sign(sdf) * jnp.expm1(-jnp.abs(sdf) / beta))


if __name__ == "__main__":
    key = jax.random.PRNGKey(0)
    # SDF values for a small batch of query points: shape (2, 4, 16, 16).
    sdf = jax.random.normal(key, (2, 4, 16, 16), dtype=jnp.float32) * 0.5
    beta_param = jnp.asarray(BETA_INIT, jnp.float32)

    out = density_forward(sdf, beta_param)
    out = jax.block_until_ready(out)

    ref = density_reference(sdf, beta_param)
    assert out.shape == sdf.shape and out.dtype == jnp.float32
    assert jnp.allclose(out, ref, rtol=1e-5, atol=1e-5)

    # Unaligned-size path (pad to lane multiple + partial final block).
    sdf2 = jax.random.normal(jax.random.PRNGKey(1), (3, 7, 11), dtype=jnp.float32)
    out2 = jax.block_until_ready(density_forward(sdf2, beta_param))
    assert jnp.allclose(out2, density_reference(sdf2, beta_param), rtol=1e-5, atol=1e-5)

    print("KERNEL_OK")
</pallas_src>

<mosaic_0001>
module attributes {stable_mosaic.version = 11 : i64} {
  func.func @_laplace_density_kernel(%arg0: i32, %arg1: memref<2xf32, #tpu.memory_space<smem>>, %arg2: memref<16x128xf32, #tpu.memory_space<vmem>>, %arg3: memref<16x128xf32, #tpu.memory_space<vmem>>) attributes {dimension_semantics = [#tpu.dimension_semantics<parallel>], iteration_bounds = array<i64: 1>, scalar_prefetch = 0 : i64, scratch_operands = 0 : i64, tpu.core_type = #tpu.core_type<tc>, window_params = [{transform_indices = @transform_0, window_bounds = array<i64: 2>}, {transform_indices = @transform_1, window_bounds = array<i64: 16, 128>}, {transform_indices = @transform_2, window_bounds = array<i64: 16, 128>}]} {
    %c0 = arith.constant 0 : index
    %0 = memref.load %arg1[%c0] : memref<2xf32, #tpu.memory_space<smem>>
    %c1 = arith.constant 1 : index
    %1 = memref.load %arg1[%c1] : memref<2xf32, #tpu.memory_space<smem>>
    %c0_0 = arith.constant 0 : index
    %c0_1 = arith.constant 0 : index
    %2 = vector.load %arg2[%c0_0, %c0_1] : memref<16x128xf32, #tpu.memory_space<vmem>>, vector<16x128xf32>
    %3 = math.absf %2 : vector<16x128xf32>
    %cst = arith.constant 0.000000e+00 : f32
    %4 = vector.broadcast %cst : f32 to vector<16x128xf32>
    %5 = arith.subf %4, %3 : vector<16x128xf32>
    %6 = vector.broadcast %0 : f32 to vector<16x128xf32>
    %7 = arith.mulf %5, %6 : vector<16x128xf32>
    %8 = math.exp %7 : vector<16x128xf32>
    %cst_2 = arith.constant 0.000000e+00 : f32
    %9 = vector.broadcast %cst_2 : f32 to vector<16x128xf32>
    %10 = arith.cmpf oge, %2, %9 : vector<16x128xf32>
    %11 = vector.broadcast %1 : f32 to vector<16x128xf32>
    %12 = arith.mulf %11, %8 : vector<16x128xf32>
    %13 = vector.broadcast %1 : f32 to vector<16x128xf32>
    %14 = arith.mulf %13, %8 : vector<16x128xf32>
    %15 = vector.broadcast %0 : f32 to vector<16x128xf32>
    %16 = arith.subf %15, %14 : vector<16x128xf32>
    %17 = arith.select %10, %12, %16 : vector<16x128xi1>, vector<16x128xf32>
    %c0_3 = arith.constant 0 : index
    %c0_4 = arith.constant 0 : index
    %18 = vector.load %arg3[%c0_3, %c0_4] : memref<16x128xf32, #tpu.memory_space<vmem>>, vector<16x128xf32>
    tpu.vector_store %arg3[%c0_3, %c0_4], %17 {strides = array<i32>} : memref<16x128xf32, #tpu.memory_space<vmem>>, vector<16x128xf32>,
    return
  }
  func.func @transform_0(%arg0: i32) -> i32 {
    %c0_i32 = arith.constant 0 : i32
    %c0_i32_0 = arith.constant 0 : i32
    return %c0_i32 : i32
  }
  func.func @transform_1(%arg0: i32) -> (i32, i32) {
    %c0_i32 = arith.constant 0 : i32
    %c0_i32_0 = arith.constant 0 : i32
    return %arg0, %c0_i32 : i32, i32
  }
  func.func @transform_2(%arg0: i32) -> (i32, i32) {
    %c0_i32 = arith.constant 0 : i32
    %c0_i32_0 = arith.constant 0 : i32
    return %arg0, %c0_i32 : i32, i32
  }
}

</mosaic_0001>

<llo_original>
// kernel: tpu_custom_call.1
$region0: #{tpu_custom_call.1}
  #allocation0 [shape = 'u32[]', space=smem, size = 0x4, offset = 0x4, fixed_abs, tag = 'smem constant byte address 0x4 - core index']
  #allocation1 [shape = 'u32[144,128]{1,0:T(1,128)}', space=vmem, size = 0x12000, scoped, tag = 'internal scratch']
  %s0 = inlined_call_operand.hbm [shape: f32[2], index: 0, kind: input, shape index: {}]
  %s1 = inlined_call_operand.hbm [shape: f32[16,128], index: 1, kind: input, shape index: {}]
  %s2 = inlined_call_operand.hbm [shape: f32[16,128], index: 2, kind: output, shape index: {}]
  %s3 = sld [smem:[#allocation0]]
  $region26: #{tpu_custom_call.1} parent=0
    _
  %s5 = ssub.s32 1, %s3
  %s6 = scalar_select 0, %s5, %s3
  $region1: #{tpu_custom_call.1} parent=0
    #allocation2 [shape = 'u8[512]{0}', space=smem, size = 0x200, scoped, tag = 'input window, operand 0, single buffered']
    #allocation3 [shape = 's32[1]{0}', space=sflag, size = 0x4, scoped, tag = 'scoped memory for tpu_custom_call.1']
    #allocation4 [shape = 's32[1]{0}', space=sflag, size = 0x4, scoped, tag = 'scoped memory for tpu_custom_call.1']
    #allocation5 [shape = 's32[1]{0}', space=sflag, size = 0x4, scoped, tag = 'scoped memory for tpu_custom_call.1']
    #allocation6 [shape = 'u8[8192]{0}', space=vmem, size = 0x2000, scoped, tag = 'input window, operand 1, single buffered']
    #allocation7 [shape = 'u8[8192]{0}', space=vmem, size = 0x2000, scoped, tag = 'output window, operand 0, single buffered']
    %7 = vsyncpa [#allocation5], 0
    %8 = vsyncpa [#allocation3], 0
    %9 = vsyncpa [#allocation4], 0
    // Predicated region
    $region2: #{tpu_custom_call.1} parent=1 // pred_check
      _
    $region3: #{tpu_custom_call.1} parent=1 // pred_check_branch
      %11 = sbr.rel (0) target = $region5
    $region4: #{tpu_custom_call.1} parent=1 // pred_region
      %s13 = ssub.s32 16, 16
      %14 = vsyncadd [#allocation5], %s13
      %17 = dma.hbm_to_smem %s0, 16, [#allocation2], [#allocation5]
    $region5: #{tpu_custom_call.1} parent=1 // pred_fallthru
      _
    // Predicated region
    $region6: #{tpu_custom_call.1} parent=1 // pred_check
      _
    $region7: #{tpu_custom_call.1} parent=1 // pred_check_branch
      %19 = sbr.rel (0) target = $region9
    $region8: #{tpu_custom_call.1} parent=1 // pred_region
      %s21 = ssub.s32 256, 256
      %22 = vsyncadd [#allocation3], %s21
      %s23 = sshll.u32 [#allocation6], 4
      %s24 = int_to_ptr.vmem [resolvable:$true] %s23
      %29 = dma.hbm_to_vmem [thread:$0]  %s1, 256, %s24, [#allocation3], 128, 128, 8
    $region9: #{tpu_custom_call.1} parent=1 // pred_fallthru
      _
    // Predicated region
    $region10: #{tpu_custom_call.1} parent=1 // pred_check
      _
    $region11: #{tpu_custom_call.1} parent=1 // pred_check_branch
      %31 = sbr.rel (0) target = $region13
    $region12: #{tpu_custom_call.1} parent=1 // pred_region
      %32 = dma.done [#allocation5], 16
    $region13: #{tpu_custom_call.1} parent=1 // pred_fallthru
      _
    // Predicated region
    $region14: #{tpu_custom_call.1} parent=1 // pred_check
      _
    $region15: #{tpu_custom_call.1} parent=1 // pred_check_branch
      %34 = sbr.rel (0) target = $region17
    $region16: #{tpu_custom_call.1} parent=1 // pred_region
      %35 = dma.done [#allocation3], 256
    $region17: #{tpu_custom_call.1} parent=1 // pred_fallthru
      _
    %36 = sfence
    %s37 = sld [smem:[#allocation2]]
    %s38 = sld [smem:[#allocation2 + $0x1]]
    %v39 = vld [vmem:[#allocation6] sm:$0xff]
    %v40 = vld [vmem:[#allocation6 + $0x8] sm:$0xff]
    %v41 = vand.u32 2147483647, %v39
    %v42 = vand.u32 2147483647, %v40
    %v43 = vsub.f32 0.0, %v41
    %v44 = vsub.f32 0.0, %v42
    %v45 = vstv %s37
    %v46 = vmul.f32 %v43, %v45
    %v47 = vmul.f32 %v44, %v45
    %v48 = vmul.f32 %v46, 1.442695
    %v49 = vpow.pop %v48
    %v50 = vmul.f32 %v47, 1.442695
    %v51 = vpow.pop %v50
    %vm52 = vcmp.ge.f32.partialorder %v39, 0.0
    %vm53 = vcmp.ge.f32.partialorder %v40, 0.0
    %v54 = vstv %s38
    %v55 = vmul.f32 %v54, %v49
    %v56 = vmul.f32 %v54, %v51
    %v57 = vsub.f32 %v45, %v55
    %v58 = vsub.f32 %v45, %v56
    %v59 = vsel %vm52, %v55, %v57
    %v60 = vsel %vm53, %v56, %v58
    %61 = vst [vmem:[#allocation7] sm:$0xff] %v59
    %62 = vst [vmem:[#allocation7 + $0x8] sm:$0xff] %v60
    // Predicated region
    $region18: #{tpu_custom_call.1} parent=1 // pred_check
      _
    $region19: #{tpu_custom_call.1} parent=1 // pred_check_branch
      %64 = sbr.rel (0) target = $region21
    $region20: #{tpu_custom_call.1} parent=1 // pred_region
      %s66 = ssub.s32 256, 256
      %67 = vsyncadd [#allocation4], %s66
      %s68 = sshll.u32 [#allocation7], 4
      %s69 = int_to_ptr.vmem [resolvable:$true] %s68
      %74 = dma.vmem_to_hbm [thread:$0]  %s69, 256, %s2, [#allocation4], 128, 128, 8
    $region21: #{tpu_custom_call.1} parent=1 // pred_fallthru
      _
    // Predicated region
    $region22: #{tpu_custom_call.1} parent=1 // pred_check
      _
    $region23: #{tpu_custom_call.1} parent=1 // pred_check_branch
      %76 = sbr.rel (0) target = $region25
    $region24: #{tpu_custom_call.1} parent=1 // pred_region
      %77 = dma.done [#allocation4], 256
    $region25: #{tpu_custom_call.1} parent=1 // pred_fallthru
      _
    %78 = vsyncpa [#allocation3], 1
    %79 = vsyncpa [#allocation4], 1
    %80 = vsyncpa [#allocation5], 1

</llo_original>
